<compile_context>
chip_gen: v7x
topology: tpu7x:2x2x1
jax: 0.10.0
libtpu: 0.0.40
codegen_flags: <defaults>
</compile_context>

<pallas_src>
import jax
import jax.numpy as jnp
from jax.experimental import pallas as pl
from jax.experimental.pallas import tpu as pltpu


def _visual_sa_kernel(local_ref, gemb_ref, wl_ref, bn_scale_ref, bn_shift_ref,
                      wc_ref, out_ref):
    """One grid step == TB batch elements.

    local_ref:    (TB, R, D) raw region features (caller dtype; f32 or bf16)
    gemb_ref:     (TB, 1, D) precomputed global embedding (f32)
    wl_ref:       (D, D)     local Linear weight, (in, out), bf16 (or f32)
    bn_scale_ref: (R, 1)     folded eval BatchNorm1d(num_region) scale
    bn_shift_ref: (R, D)     folded BN shift with the Linear bias bl folded in
    wc_ref:       (1, D)     Linear(embed_dim, 1) weight as a lane-dense row
    out_ref:      (TB, 1, D) l2-normalized new global features
    """
    tb, r, d = local_ref.shape
    local = local_ref[...]                                          # (TB, R, D)

    # embedding_local: Linear on the MXU (bf16 x bf16 -> f32 accumulate).
    lhs = local.reshape(tb * r, d).astype(wl_ref.dtype)
    l_lin = jnp.dot(lhs, wl_ref[...], preferred_element_type=jnp.float32)
    l_lin = l_lin.reshape(tb, r, d)
    # Folded eval-mode BatchNorm1d(num_region) (+ bias bl) then Tanh; Dropout = id.
    l_emb = jnp.tanh(l_lin * bn_scale_ref[...] + bn_shift_ref[...])  # (TB, R, D)

    # Attention logits: VPU multiply + XLU lane reduce (no N=1 MXU matmul).
    # bc is omitted — softmax over regions is invariant to a scalar shift.
    g_emb = gemb_ref[...].astype(jnp.float32)                        # (TB, 1, D)
    common = l_emb * g_emb                                           # (TB, R, D)
    logits = jnp.sum(common * wc_ref[...], axis=-1, keepdims=True)   # (TB, R, 1)

    # Softmax over the region axis (PyTorch Softmax(dim=1)).
    logits = logits - jnp.max(logits, axis=1, keepdims=True)
    e = jnp.exp(logits)
    attn = e / jnp.sum(e, axis=1, keepdims=True)                     # (TB, R, 1)

    # Weighted sum of the *raw* region features (f32 accumulate), then l2norm.
    new_g = jnp.sum(attn * local.astype(jnp.float32), axis=1, keepdims=True)  # (TB,1,D)
    norm = jnp.sqrt(jnp.sum(new_g * new_g, axis=-1, keepdims=True)) + 1e-8
    out_ref[...] = (new_g / norm).astype(out_ref.dtype)


def visual_sa_forward(local, raw_global, params, *, bn_eps=1e-5,
                      matmul_dtype=jnp.bfloat16, batch_tile=16):
    """Pallas-backed VisualSA.forward (eval mode).

    local:      (B, R, D)  — may be f32 or bf16 (bf16 halves the HBM stream)
    raw_global: (B, D)
    Pick batch_tile so batch_tile*R is >= 256 (v6e/v7x MXU) or >= 128 (v5e).
    """
    B, R, D = local.shape
    assert raw_global.shape == (B, D)
    f32 = jnp.float32

    # ---- fold eval-mode BatchNorms ----------------------------------------
    # BN over regions (per output *row* of the local path): keep as scale/shift,
    # folding the Linear bias bl into the shift -> one fused multiply-add.
    bn_l_scale = (params["bn_l_gamma"] / jnp.sqrt(params["bn_l_var"] + bn_eps)).astype(f32)
    bn_l_shift0 = (params["bn_l_beta"] - params["bn_l_mean"] * bn_l_scale).astype(f32)
    bn_l_scale = bn_l_scale.reshape(R, 1)
    bn_l_shift = (params["bl"].astype(f32)[None, :] * bn_l_scale
                  + bn_l_shift0.reshape(R, 1))                       # (R, D)

    # BN over embed_dim on the global path commutes with the Linear -> fold into Wg/bg.
    bn_g_scale = (params["bn_g_gamma"] / jnp.sqrt(params["bn_g_var"] + bn_eps)).astype(f32)
    bn_g_shift = (params["bn_g_beta"] - params["bn_g_mean"] * bn_g_scale).astype(f32)
    wg = params["wg"].astype(f32) * bn_g_scale[None, :]
    bg = params["bg"].astype(f32) * bn_g_scale + bn_g_shift

    # ---- global-embedding path hoisted to one well-shaped XLA GEMM ---------
    # Inside the kernel this would be an M=TB-row matmul with a second resident
    # DxD weight (poor MXU fill, double the weight VMEM footprint).
    g_emb = jnp.tanh(raw_global.astype(f32) @ wg + bg)               # (B, D) f32

    # ---- kernel operands ----------------------------------------------------
    wl = params["wl"].astype(matmul_dtype)                           # (D, D), (in, out)
    wc_row = params["wc"].reshape(1, D).astype(f32)
    # bc is dropped entirely: softmax is shift-invariant.

    # ---- batch blocking (keep grid length >= 2 when B >= 2 for v7x megacore) -
    tb = int(max(1, min(int(batch_tile), -(-B // 2))))
    num_tiles = -(-B // tb)
    Bp = num_tiles * tb
    if Bp != B:
        pad = Bp - B
        local_p = jnp.concatenate(
            [local, jnp.zeros((pad, R, D), local.dtype)], axis=0)
        gemb_p = jnp.concatenate([g_emb, jnp.zeros((pad, D), f32)], axis=0)
    else:
        local_p, gemb_p = local, g_emb
    gemb_p = gemb_p.reshape(Bp, 1, D)

    grid_spec = pltpu.PrefetchScalarGridSpec(
        num_scalar_prefetch=0,
        grid=(num_tiles,),
        in_specs=[
            pl.BlockSpec((tb, R, D), lambda i: (i, 0, 0)),   # local (streamed)
            pl.BlockSpec((tb, 1, D), lambda i: (i, 0, 0)),   # g_emb (streamed)
            pl.BlockSpec((D, D), lambda i: (0, 0)),          # wl (VMEM-resident)
            pl.BlockSpec((R, 1), lambda i: (0, 0)),          # bn_l scale
            pl.BlockSpec((R, D), lambda i: (0, 0)),          # bn_l shift (+bl)
            pl.BlockSpec((1, D), lambda i: (0, 0)),          # wc row
        ],
        out_specs=pl.BlockSpec((tb, 1, D), lambda i: (i, 0, 0)),
    )

    out3 = pl.pallas_call(
        _visual_sa_kernel,
        out_shape=jax.ShapeDtypeStruct((Bp, 1, D), local.dtype),
        grid_spec=grid_spec,
        compiler_params=pltpu.CompilerParams(
            dimension_semantics=("parallel",),
        ),
    )(local_p, gemb_p, wl, bn_l_scale, bn_l_shift, wc_row)

    return out3.reshape(Bp, D)[:B]

# TODO(synk): training-mode semantics (Dropout RNG masks, BatchNorm batch
# statistics across the batch) are not implemented; kernel matches eval mode.


def _reference(local, raw_global, params, bn_eps=1e-5):
    """Pure-JAX f32 mirror of the PyTorch VisualSA.forward (eval mode)."""
    f32 = jnp.float32
    hp = jax.lax.Precision.HIGHEST
    local = local.astype(f32)
    raw_global = raw_global.astype(f32)

    l_lin = jnp.einsum("brd,de->bre", local, params["wl"].astype(f32),
                       precision=hp) + params["bl"]
    l_bn = (l_lin - params["bn_l_mean"][None, :, None]) / jnp.sqrt(
        params["bn_l_var"][None, :, None] + bn_eps)
    l_bn = l_bn * params["bn_l_gamma"][None, :, None] + params["bn_l_beta"][None, :, None]
    l_emb = jnp.tanh(l_bn)

    g_lin = jnp.dot(raw_global, params["wg"].astype(f32), precision=hp) + params["bg"]
    g_bn = (g_lin - params["bn_g_mean"][None, :]) / jnp.sqrt(
        params["bn_g_var"][None, :] + bn_eps)
    g_bn = g_bn * params["bn_g_gamma"][None, :] + params["bn_g_beta"][None, :]
    g_emb = jnp.tanh(g_bn)

    common = l_emb * g_emb[:, None, :]
    logits = jnp.einsum("brd,d->br", common, params["wc"].astype(f32),
                        precision=hp) + params["bc"]
    attn = jax.nn.softmax(logits, axis=1)

    new_g = jnp.sum(attn[..., None] * local, axis=1)
    norm = jnp.sqrt(jnp.sum(new_g * new_g, axis=-1, keepdims=True)) + 1e-8
    return new_g / norm


if __name__ == "__main__":
    key = jax.random.PRNGKey(0)
    B, R, D = 4, 8, 128   # batch, num_region, embed_dim (small test shapes)

    keys = jax.random.split(key, 12)
    r_lin = (6.0 / (D + D)) ** 0.5
    r_com = (6.0 / (D + 1)) ** 0.5
    params = {
        # Linear weights stored as (in, out) == PyTorch weight.T
        "wl": jax.random.uniform(keys[0], (D, D), jnp.float32, -r_lin, r_lin),
        "bl": jnp.zeros((D,), jnp.float32),
        "wg": jax.random.uniform(keys[1], (D, D), jnp.float32, -r_lin, r_lin),
        "bg": jnp.zeros((D,), jnp.float32),
        "wc": jax.random.uniform(keys[2], (D,), jnp.float32, -r_com, r_com),
        "bc": jnp.zeros((), jnp.float32),
        # non-trivial eval-mode BatchNorm stats / affine params
        "bn_l_gamma": 1.0 + 0.1 * jax.random.normal(keys[3], (R,), jnp.float32),
        "bn_l_beta": 0.1 * jax.random.normal(keys[4], (R,), jnp.float32),
        "bn_l_mean": 0.1 * jax.random.normal(keys[5], (R,), jnp.float32),
        "bn_l_var": jnp.abs(1.0 + 0.1 * jax.random.normal(keys[6], (R,), jnp.float32)),
        "bn_g_gamma": 1.0 + 0.1 * jax.random.normal(keys[7], (D,), jnp.float32),
        "bn_g_beta": 0.1 * jax.random.normal(keys[8], (D,), jnp.float32),
        "bn_g_mean": 0.1 * jax.random.normal(keys[9], (D,), jnp.float32),
        "bn_g_var": jnp.abs(1.0 + 0.1 * jax.random.normal(keys[10], (D,), jnp.float32)),
    }

    local = jax.random.normal(keys[11], (B, R, D), jnp.float32)
    raw_global = jnp.mean(local, axis=1)   # "raw image by averaging regions"

    ref = _reference(local, raw_global, params)

    # Exact-math path (f32 MXU operands) — tight check against the f32 reference.
    out_exact = visual_sa_forward(local, raw_global, params,
                                  matmul_dtype=jnp.float32)
    out_exact = jax.block_until_ready(out_exact)
    assert out_exact.shape == (B, D)
    err_exact = float(jnp.max(jnp.abs(out_exact - ref)))
    assert err_exact < 5e-3, err_exact

    # Default fast path (bf16 MXU operands, f32 accumulation).
    out = visual_sa_forward(local, raw_global, params)
    out = jax.block_until_ready(out)
    assert out.shape == (B, D)
    err = float(jnp.max(jnp.abs(out - ref)))
    assert err < 5e-2, err

    print("KERNEL_OK")
</pallas_src>

<mosaic_0001>
module attributes {stable_mosaic.version = 11 : i64} {
  func.func @_visual_sa_kernel(%arg0: i32, %arg1: memref<2x8x128xf32, #tpu.memory_space<vmem>>, %arg2: memref<2x1x128xf32, #tpu.memory_space<vmem>>, %arg3: memref<128x128xf32, #tpu.memory_space<vmem>>, %arg4: memref<8x1xf32, #tpu.memory_space<vmem>>, %arg5: memref<8x128xf32, #tpu.memory_space<vmem>>, %arg6: memref<1x128xf32, #tpu.memory_space<vmem>>, %arg7: memref<2x1x128xf32, #tpu.memory_space<vmem>>) attributes {dimension_semantics = [#tpu.dimension_semantics<parallel>], iteration_bounds = array<i64: 2>, scalar_prefetch = 0 : i64, scratch_operands = 0 : i64, tpu.core_type = #tpu.core_type<tc>, window_params = [{transform_indices = @transform_0, window_bounds = array<i64: 2, 8, 128>}, {transform_indices = @transform_1, window_bounds = array<i64: 2, 1, 128>}, {pipeline_mode = #tpu.pipeline_mode<synchronous>, transform_indices = @transform_2, window_bounds = array<i64: 128, 128>}, {pipeline_mode = #tpu.pipeline_mode<synchronous>, transform_indices = @transform_3, window_bounds = array<i64: 8, 1>}, {pipeline_mode = #tpu.pipeline_mode<synchronous>, transform_indices = @transform_4, window_bounds = array<i64: 8, 128>}, {pipeline_mode = #tpu.pipeline_mode<synchronous>, transform_indices = @transform_5, window_bounds = array<i64: 1, 128>}, {transform_indices = @transform_6, window_bounds = array<i64: 2, 1, 128>}]} {
    %c0 = arith.constant 0 : index
    %c0_0 = arith.constant 0 : index
    %c0_1 = arith.constant 0 : index
    %0 = vector.load %arg1[%c0, %c0_0, %c0_1] : memref<2x8x128xf32, #tpu.memory_space<vmem>>, vector<2x8x128xf32>
    %1 = vector.shape_cast %0 : vector<2x8x128xf32> to vector<16x128xf32>
    %c0_2 = arith.constant 0 : index
    %c0_3 = arith.constant 0 : index
    %2 = vector.load %arg3[%c0_2, %c0_3] : memref<128x128xf32, #tpu.memory_space<vmem>>, vector<128x128xf32>
    %cst = arith.constant dense<0.000000e+00> : vector<16x128xf32>
    %3 = tpu.matmul %1, %2, %cst {dimension_numbers = #tpu.dot_dimension_numbers<[1], [0], [0], [1], [0, 0, 1, 1], [], []>} : vector<16x128xf32>, vector<128x128xf32>, vector<16x128xf32> -> vector<16x128xf32>
    %4 = vector.shape_cast %3 : vector<16x128xf32> to vector<2x8x128xf32>
    %c0_4 = arith.constant 0 : index
    %c0_5 = arith.constant 0 : index
    %5 = vector.load %arg4[%c0_4, %c0_5] : memref<8x1xf32, #tpu.memory_space<vmem>>, vector<8x1xf32>
    %6 = vector.shape_cast %5 : vector<8x1xf32> to vector<1x8x1xf32>
    %7 = vector.broadcast %6 : vector<1x8x1xf32> to vector<2x8x128xf32>
    %8 = arith.mulf %4, %7 : vector<2x8x128xf32>
    %c0_6 = arith.constant 0 : index
    %c0_7 = arith.constant 0 : index
    %9 = vector.load %arg5[%c0_6, %c0_7] : memref<8x128xf32, #tpu.memory_space<vmem>>, vector<8x128xf32>
    %10 = vector.shape_cast %9 : vector<8x128xf32> to vector<1x8x128xf32>
    %11 = vector.broadcast %10 : vector<1x8x128xf32> to vector<2x8x128xf32>
    %12 = arith.addf %8, %11 : vector<2x8x128xf32>
    %13 = math.tanh %12 : vector<2x8x128xf32>
    %c0_8 = arith.constant 0 : index
    %c0_9 = arith.constant 0 : index
    %c0_10 = arith.constant 0 : index
    %14 = vector.load %arg2[%c0_8, %c0_9, %c0_10] : memref<2x1x128xf32, #tpu.memory_space<vmem>>, vector<2x1x128xf32>
    %15 = vector.broadcast %14 : vector<2x1x128xf32> to vector<2x8x128xf32>
    %16 = arith.mulf %13, %15 : vector<2x8x128xf32>
    %c0_11 = arith.constant 0 : index
    %c0_12 = arith.constant 0 : index
    %17 = vector.load %arg6[%c0_11, %c0_12] : memref<1x128xf32, #tpu.memory_space<vmem>>, vector<1x128xf32>
    %18 = vector.shape_cast %17 : vector<1x128xf32> to vector<1x1x128xf32>
    %19 = vector.broadcast %18 : vector<1x1x128xf32> to vector<2x8x128xf32>
    %20 = arith.mulf %16, %19 : vector<2x8x128xf32>
    %cst_13 = arith.constant dense<0.000000e+00> : vector<2x8xf32>
    %21 = vector.multi_reduction <add>, %20, %cst_13 [2] : vector<2x8x128xf32> to vector<2x8xf32>
    %22 = vector.shape_cast %21 : vector<2x8xf32> to vector<2x8x1xf32>
    %cst_14 = arith.constant dense<0xFF800000> : vector<2x1xf32>
    %23 = vector.multi_reduction <maximumf>, %22, %cst_14 [1] : vector<2x8x1xf32> to vector<2x1xf32>
    %24 = vector.shape_cast %23 : vector<2x1xf32> to vector<2x1x1xf32>
    %25 = vector.broadcast %24 : vector<2x1x1xf32> to vector<2x8x1xf32>
    %26 = arith.subf %22, %25 : vector<2x8x1xf32>
    %27 = math.exp %26 : vector<2x8x1xf32>
    %cst_15 = arith.constant dense<0.000000e+00> : vector<2x1xf32>
    %28 = vector.multi_reduction <add>, %27, %cst_15 [1] : vector<2x8x1xf32> to vector<2x1xf32>
    %29 = vector.shape_cast %28 : vector<2x1xf32> to vector<2x1x1xf32>
    %30 = vector.broadcast %29 : vector<2x1x1xf32> to vector<2x8x1xf32>
    %31 = arith.divf %27, %30 : vector<2x8x1xf32>
    %32 = vector.broadcast %31 : vector<2x8x1xf32> to vector<2x8x128xf32>
    %33 = arith.mulf %32, %0 : vector<2x8x128xf32>
    %cst_16 = arith.constant dense<0.000000e+00> : vector<2x128xf32>
    %34 = vector.multi_reduction <add>, %33, %cst_16 [1] : vector<2x8x128xf32> to vector<2x128xf32>
    %35 = vector.shape_cast %34 : vector<2x128xf32> to vector<2x1x128xf32>
    %36 = arith.mulf %35, %35 : vector<2x1x128xf32>
    %cst_17 = arith.constant dense<0.000000e+00> : vector<2x1xf32>
    %37 = vector.multi_reduction <add>, %36, %cst_17 [2] : vector<2x1x128xf32> to vector<2x1xf32>
    %38 = vector.shape_cast %37 : vector<2x1xf32> to vector<2x1x1xf32>
    %39 = math.sqrt %38 : vector<2x1x1xf32>
    %cst_18 = arith.constant 9.99999993E-9 : f32
    %40 = vector.broadcast %cst_18 : f32 to vector<2x1x1xf32>
    %41 = arith.addf %39, %40 : vector<2x1x1xf32>
    %42 = vector.broadcast %41 : vector<2x1x1xf32> to vector<2x1x128xf32>
    %43 = arith.divf %35, %42 : vector<2x1x128xf32>
    %c0_19 = arith.constant 0 : index
    %c0_20 = arith.constant 0 : index
    %c0_21 = arith.constant 0 : index
    %44 = vector.load %arg7[%c0_19, %c0_20, %c0_21] : memref<2x1x128xf32, #tpu.memory_space<vmem>>, vector<2x1x128xf32>
    tpu.vector_store %arg7[%c0_19, %c0_20, %c0_21], %43 {strides = array<i32>} : memref<2x1x128xf32, #tpu.memory_space<vmem>>, vector<2x1x128xf32>,
    return
  }
  func.func @transform_0(%arg0: i32) -> (i32, i32, i32) {
    %c0_i32 = arith.constant 0 : i32
    %c0_i32_0 = arith.constant 0 : i32
    %c0_i32_1 = arith.constant 0 : i32
    return %arg0, %c0_i32, %c0_i32_0 : i32, i32, i32
  }
  func.func @transform_1(%arg0: i32) -> (i32, i32, i32) {
    %c0_i32 = arith.constant 0 : i32
    %c0_i32_0 = arith.constant 0 : i32
    %c0_i32_1 = arith.constant 0 : i32
    return %arg0, %c0_i32, %c0_i32_0 : i32, i32, i32
  }
  func.func @transform_2(%arg0: i32) -> (i32, i32) {
    %c0_i32 = arith.constant 0 : i32
    %c0_i32_0 = arith.constant 0 : i32
    %c0_i32_1 = arith.constant 0 : i32
    return %c0_i32, %c0_i32_0 : i32, i32
  }
  func.func @transform_3(%arg0: i32) -> (i32, i32) {
    %c0_i32 = arith.constant 0 : i32
    %c0_i32_0 = arith.constant 0 : i32
    %c0_i32_1 = arith.constant 0 : i32
    return %c0_i32, %c0_i32_0 : i32, i32
  }
  func.func @transform_4(%arg0: i32) -> (i32, i32) {
    %c0_i32 = arith.constant 0 : i32
    %c0_i32_0 = arith.constant 0 : i32
    %c0_i32_1 = arith.constant 0 : i32
    return %c0_i32, %c0_i32_0 : i32, i32
  }
  func.func @transform_5(%arg0: i32) -> (i32, i32) {
    %c0_i32 = arith.constant 0 : i32
    %c0_i32_0 = arith.constant 0 : i32
    %c0_i32_1 = arith.constant 0 : i32
    return %c0_i32, %c0_i32_0 : i32, i32
  }
  func.func @transform_6(%arg0: i32) -> (i32, i32, i32) {
    %c0_i32 = arith.constant 0 : i32
    %c0_i32_0 = arith.constant 0 : i32
    %c0_i32_1 = arith.constant 0 : i32
    return %arg0, %c0_i32, %c0_i32_0 : i32, i32, i32
  }
}

</mosaic_0001>

<llo_original>
// kernel: tpu_custom_call.1
$region0: #{tpu_custom_call.1}
  #allocation0 [shape = 'u32[]', space=smem, size = 0x4, offset = 0x4, fixed_abs, tag = 'smem constant byte address 0x4 - core index']
  #allocation1 [shape = 'u32[144,128]{1,0:T(1,128)}', space=vmem, size = 0x12000, scoped, tag = 'internal scratch']
  %s0 = inlined_call_operand.hbm [shape: f32[4,8,128], index: 0, kind: input, shape index: {}]
  %s1 = inlined_call_operand.vmem [shape: f32[4,1,128], index: 1, kind: input, shape index: {}]
  %s2 = inlined_call_operand.hbm [shape: f32[128,128], index: 2, kind: input, shape index: {}]
  %s3 = inlined_call_operand.vmem [shape: f32[8,1], index: 3, kind: input, shape index: {}]
  %s4 = inlined_call_operand.vmem [shape: f32[8,128], index: 4, kind: input, shape index: {}]
  %s5 = inlined_call_operand.vmem [shape: f32[1,128], index: 5, kind: input, shape index: {}]
  %s6 = inlined_call_operand.hbm [shape: f32[4,1,128], index: 6, kind: output, shape index: {}]
  %s7 = sld [smem:[#allocation0]]
  $region65: #{tpu_custom_call.1} parent=0
    _
  %s9 = ssub.s32 1, %s7
  %s10 = scalar_select 0, %s9, %s7
  $region1: #{tpu_custom_call.1} parent=0
    #allocation2 [shape = 'u8[16384]{0}', space=vmem, size = 0x4000, scoped, tag = 'input window, operand 0']
    #allocation3 [shape = 's32[2]{0}', space=sflag, size = 0x8, scoped, tag = 'scoped memory for tpu_custom_call.1']
    #allocation4 [shape = 's32[2]{0}', space=sflag, size = 0x8, scoped, tag = 'scoped memory for tpu_custom_call.1']
    #allocation5 [shape = 'u8[65536]{0}', space=vmem, size = 0x10000, scoped, tag = 'input window, operand 2, single buffered']
    #allocation6 [shape = 's32[1]{0}', space=sflag, size = 0x4, scoped, tag = 'scoped memory for tpu_custom_call.1']
    #allocation7 [shape = 'u8[2048]{0}', space=vmem, size = 0x800, scoped, tag = 'output window, operand 0']
    %11 = vsyncpa [#allocation3], 0
    %s12 = scalar_lea.sflag [#allocation3], 1
    %13 = vsyncpa %s12, 0
    %14 = vsyncpa [#allocation6], 0
    %15 = vsyncpa [#allocation4], 0
    %s16 = scalar_lea.sflag [#allocation4], 1
    %17 = vsyncpa %s16, 0
    loop: start=0, step=1, limit=4
    $region2: #{tpu_custom_call.1} parent=1 // loop_pre_header
      _
    $region3: #{tpu_custom_call.1} parent=1 // loop_header
      %s19 = sphi 0, %s23
      %p20 = scmp.ge.s32.totalorder %s19, 4
      %s29 = sphi 0, %s31
      %s32 = sphi 0, %s29
      %s33 = sphi 0, %s32
      %s49 = sphi 0, %s33
      %s55 = sphi 0, %s57
      %s58 = sphi 0, %s55
      %s59 = sphi 0, %s58
      %s75 = sphi 0, %s59
      %s79 = sphi 0, %s79
      %s81 = sphi 0, %s79
      %s82 = sphi 0, %s81
      %s96 = sphi 0, %s82
      %s100 = sphi 0, %s100
      %s102 = sphi 0, %s100
      %s103 = sphi 0, %s102
      %s117 = sphi 0, %s103
      %s121 = sphi 0, %s121
      %s123 = sphi 0, %s121
      %s124 = sphi 0, %s123
      %s138 = sphi 0, %s124
      %s142 = sphi 0, %s142
      %s144 = sphi 0, %s142
      %s145 = sphi 0, %s144
      %s159 = sphi 0, %s145
      %s165 = sphi 0, %s167
      %s168 = sphi 0, %s165
      %s169 = sphi 0, %s168
      %s185 = sphi 0, %s169
    $region4: #{tpu_custom_call.1} parent=1 // loop_header_branch
      %22 = sbr.rel (%p20) target = $region8
    $region5: #{tpu_custom_call.1} parent=1 // loop_body
      %s24 = ssub.s32 %s19, 1
      %s25 = ssub.s32 %s19, 2
      %s26 = sadd.s32 %s19, 1
      %s27 = ssub.s32 %s19, %s26
      %p28 = scmp.eq.s32.totalorder %s27, 0
      %s30 = sadd.s32 %s29, 1
      %s31 = scalar_select %p28, %s29, %s30
      %p34 = pneg %p28
      %p35 = scmp.eq.s32.totalorder %s19, 1
      %p36 = por %p34, %p35
      %p37 = scmp.ne.s32.totalorder %s29, %s32
      %p38 = scmp.eq.s32.totalorder %s19, 0
      %p39 = por %p37, %p38
      %p40 = scmp.ne.s32.totalorder %s29, %s32
      %p41 = scmp.eq.s32.totalorder %s24, 1
      %p42 = por %p40, %p41
      %p43 = scmp.ne.s32.totalorder %s32, %s33
      %p44 = scmp.eq.s32.totalorder %s24, 0
      %p45 = por %p43, %p44
      %p46 = scmp.ne.s32.totalorder %s32, %s33
      %p47 = scmp.eq.s32.totalorder %s25, 1
      %p48 = por %p46, %p47
      %p50 = scmp.ne.s32.totalorder %s33, %s49
      %p51 = scmp.eq.s32.totalorder %s25, 0
      %p52 = por %p50, %p51
      %s53 = ssub.s32 %s19, %s26
      %p54 = scmp.eq.s32.totalorder %s53, 0
      %s56 = sadd.s32 %s55, 1
      %s57 = scalar_select %p54, %s55, %s56
      %p60 = pneg %p54
      %p61 = scmp.eq.s32.totalorder %s19, 1
      %p62 = por %p60, %p61
      %p63 = scmp.ne.s32.totalorder %s55, %s58
      %p64 = scmp.eq.s32.totalorder %s19, 0
      %p65 = por %p63, %p64
      %p66 = scmp.ne.s32.totalorder %s55, %s58
      %p67 = scmp.eq.s32.totalorder %s24, 1
      %p68 = por %p66, %p67
      %p69 = scmp.ne.s32.totalorder %s58, %s59
      %p70 = scmp.eq.s32.totalorder %s24, 0
      %p71 = por %p69, %p70
      %p72 = scmp.ne.s32.totalorder %s58, %s59
      %p73 = scmp.eq.s32.totalorder %s25, 1
      %p74 = por %p72, %p73
      %p76 = scmp.ne.s32.totalorder %s59, %s75
      %p77 = scmp.eq.s32.totalorder %s25, 0
      %p78 = por %p76, %p77
      %s80 = sadd.s32 %s79, 1
      %p83 = scmp.eq.s32.totalorder %s19, 1
      %p84 = scmp.ne.s32.totalorder %s79, %s81
      %p85 = scmp.eq.s32.totalorder %s19, 0
      %p86 = por %p84, %p85
      %p87 = scmp.ne.s32.totalorder %s79, %s81
      %p88 = scmp.eq.s32.totalorder %s24, 1
      %p89 = por %p87, %p88
      %p90 = scmp.ne.s32.totalorder %s81, %s82
      %p91 = scmp.eq.s32.totalorder %s24, 0
      %p92 = por %p90, %p91
      %p93 = scmp.ne.s32.totalorder %s81, %s82
      %p94 = scmp.eq.s32.totalorder %s25, 1
      %p95 = por %p93, %p94
      %p97 = scmp.ne.s32.totalorder %s82, %s96
      %p98 = scmp.eq.s32.totalorder %s25, 0
      %p99 = por %p97, %p98
      %s101 = sadd.s32 %s100, 1
      %p104 = scmp.eq.s32.totalorder %s19, 1
      %p105 = scmp.ne.s32.totalorder %s100, %s102
      %p106 = scmp.eq.s32.totalorder %s19, 0
      %p107 = por %p105, %p106
      %p108 = scmp.ne.s32.totalorder %s100, %s102
      %p109 = scmp.eq.s32.totalorder %s24, 1
      %p110 = por %p108, %p109
      %p111 = scmp.ne.s32.totalorder %s102, %s103
      %p112 = scmp.eq.s32.totalorder %s24, 0
      %p113 = por %p111, %p112
      %p114 = scmp.ne.s32.totalorder %s102, %s103
      %p115 = scmp.eq.s32.totalorder %s25, 1
      %p116 = por %p114, %p115
      %p118 = scmp.ne.s32.totalorder %s103, %s117
      %p119 = scmp.eq.s32.totalorder %s25, 0
      %p120 = por %p118, %p119
      %s122 = sadd.s32 %s121, 1
      %p125 = scmp.eq.s32.totalorder %s19, 1
      %p126 = scmp.ne.s32.totalorder %s121, %s123
      %p127 = scmp.eq.s32.totalorder %s19, 0
      %p128 = por %p126, %p127
      %p129 = scmp.ne.s32.totalorder %s121, %s123
      %p130 = scmp.eq.s32.totalorder %s24, 1
      %p131 = por %p129, %p130
      %p132 = scmp.ne.s32.totalorder %s123, %s124
      %p133 = scmp.eq.s32.totalorder %s24, 0
      %p134 = por %p132, %p133
      %p135 = scmp.ne.s32.totalorder %s123, %s124
      %p136 = scmp.eq.s32.totalorder %s25, 1
      %p137 = por %p135, %p136
      %p139 = scmp.ne.s32.totalorder %s124, %s138
      %p140 = scmp.eq.s32.totalorder %s25, 0
      %p141 = por %p139, %p140
      %s143 = sadd.s32 %s142, 1
      %p146 = scmp.eq.s32.totalorder %s19, 1
      %p147 = scmp.ne.s32.totalorder %s142, %s144
      %p148 = scmp.eq.s32.totalorder %s19, 0
      %p149 = por %p147, %p148
      %p150 = scmp.ne.s32.totalorder %s142, %s144
      %p151 = scmp.eq.s32.totalorder %s24, 1
      %p152 = por %p150, %p151
      %p153 = scmp.ne.s32.totalorder %s144, %s145
      %p154 = scmp.eq.s32.totalorder %s24, 0
      %p155 = por %p153, %p154
      %p156 = scmp.ne.s32.totalorder %s144, %s145
      %p157 = scmp.eq.s32.totalorder %s25, 1
      %p158 = por %p156, %p157
      %p160 = scmp.ne.s32.totalorder %s145, %s159
      %p161 = scmp.eq.s32.totalorder %s25, 0
      %p162 = por %p160, %p161
      %s163 = ssub.s32 %s19, %s26
      %p164 = scmp.eq.s32.totalorder %s163, 0
      %s166 = sadd.s32 %s165, 1
      %s167 = scalar_select %p164, %s165, %s166
      %p170 = pneg %p164
      %p171 = scmp.eq.s32.totalorder %s19, 1
      %p172 = por %p170, %p171
      %p173 = scmp.ne.s32.totalorder %s165, %s168
      %p174 = scmp.eq.s32.totalorder %s19, 0
      %p175 = por %p173, %p174
      %p176 = scmp.ne.s32.totalorder %s165, %s168
      %p177 = scmp.eq.s32.totalorder %s24, 1
      %p178 = por %p176, %p177
      %p179 = scmp.ne.s32.totalorder %s168, %s169
      %p180 = scmp.eq.s32.totalorder %s24, 0
      %p181 = por %p179, %p180
      %p182 = scmp.ne.s32.totalorder %s168, %s169
      %p183 = scmp.eq.s32.totalorder %s25, 1
      %p184 = por %p182, %p183
      %p186 = scmp.ne.s32.totalorder %s169, %s185
      %p187 = scmp.eq.s32.totalorder %s25, 0
      %p188 = por %p186, %p187
      %p189 = scmp.le.s32.totalorder 1, %s19
      %p190 = scmp.lt.s32.totalorder %s19, 3
      %p191 = pnand %p189, %p190
      %p192 = pneg %p191
      // Predicated region
      $region9: #{tpu_custom_call.1} parent=5 // pred_check
        _
      $region10: #{tpu_custom_call.1} parent=5 // pred_check_branch
        %194 = sbr.rel (%p191) target = $region12
      $region11: #{tpu_custom_call.1} parent=5 // pred_region
        %s195 = ssub.s32 %s19, 1
        // Predicated region
        $region13: #{tpu_custom_call.1} parent=11 // pred_check
          %p196 = pneg %p92
        $region14: #{tpu_custom_call.1} parent=11 // pred_check_branch
          %198 = sbr.rel (%p196) target = $region16
        $region15: #{tpu_custom_call.1} parent=11 // pred_region
          %s200 = ssub.s32 2048, 2048
          %201 = vsyncadd [#allocation6], %s200
          %s202 = sshll.u32 [#allocation5], 4
          %s203 = int_to_ptr.vmem [resolvable:$true] %s202
          %208 = dma.hbm_to_vmem [thread:$0]  %s2, 2048, %s203, [#allocation6], 128, 128, 8
        $region16: #{tpu_custom_call.1} parent=11 // pred_fallthru
          _
        // Predicated region
        $region17: #{tpu_custom_call.1} parent=11 // pred_check
          %p209 = pneg %p113
        $region18: #{tpu_custom_call.1} parent=11 // pred_check_branch
          %211 = sbr.rel (%p209) target = $region20
        $region19: #{tpu_custom_call.1} parent=11 // pred_region
          _
        $region20: #{tpu_custom_call.1} parent=11 // pred_fallthru
          _
        // Predicated region
        $region21: #{tpu_custom_call.1} parent=11 // pred_check
          %p212 = pneg %p134
        $region22: #{tpu_custom_call.1} parent=11 // pred_check_branch
          %214 = sbr.rel (%p212) target = $region24
        $region23: #{tpu_custom_call.1} parent=11 // pred_region
          _
        $region24: #{tpu_custom_call.1} parent=11 // pred_fallthru
          _
        // Predicated region
        $region25: #{tpu_custom_call.1} parent=11 // pred_check
          %p215 = pneg %p155
        $region26: #{tpu_custom_call.1} parent=11 // pred_check_branch
          %217 = sbr.rel (%p215) target = $region28
        $region27: #{tpu_custom_call.1} parent=11 // pred_region
          _
        $region28: #{tpu_custom_call.1} parent=11 // pred_fallthru
          _
      $region12: #{tpu_custom_call.1} parent=5 // pred_fallthru
        _
      %p218 = scmp.lt.s32.totalorder %s19, 2
      // Predicated region
      $region29: #{tpu_custom_call.1} parent=5 // pred_check
        %p219 = pneg %p218
      $region30: #{tpu_custom_call.1} parent=5 // pred_check_branch
        %221 = sbr.rel (%p219) target = $region32
      $region31: #{tpu_custom_call.1} parent=5 // pred_region
        // Predicated region
        $region33: #{tpu_custom_call.1} parent=31 // pred_check
          %p222 = pneg %p39
        $region34: #{tpu_custom_call.1} parent=31 // pred_check_branch
          %224 = sbr.rel (%p222) target = $region36
        $region35: #{tpu_custom_call.1} parent=31 // pred_region
          %s225 = sand.u32 %s29, 1
          %s226 = scalar_lea.sflag [#allocation3], %s225
          %s227 = sand.u32 %s29, 1
          %s228 = smul.addr %s227, 16
          %s229 = scalar_lea.vmem [#allocation2], %s228
          %s230 = smul.u32 2, %s19
          %s232 = ssub.s32 256, 256
          %233 = vsyncadd %s226, %s232
          %s234 = smul.addr %s230, 128
          %s235 = scalar_lea.hbm %s0, %s234
          %s236 = sshll.u32 %s229, 4
          %s237 = int_to_ptr.vmem [resolvable:$true] %s236
          %242 = dma.hbm_to_vmem [thread:$0]  %s235, 256, %s237, %s226, 128, 128, 8
        $region36: #{tpu_custom_call.1} parent=31 // pred_fallthru
          _
        // Predicated region
        $region37: #{tpu_custom_call.1} parent=31 // pred_check
          %p243 = pneg %p65
        $region38: #{tpu_custom_call.1} parent=31 // pred_check_branch
          %245 = sbr.rel (%p243) target = $region40
        $region39: #{tpu_custom_call.1} parent=31 // pred_region
          %s246 = smul.u32 2, %s19
          %p247 = scmp.lt.s32.totalorder %s246, 3
          %s248 = scalar_select %p247, %s246, 3
          %s249 = scalar_lea.vmem %s1, %s248
          %s250 = smul.u32 2, %s19
        $region40: #{tpu_custom_call.1} parent=31 // pred_fallthru
          _
      $region32: #{tpu_custom_call.1} parent=5 // pred_fallthru
        _
      %p251 = scmp.le.s32.totalorder 1, %s19
      %p252 = scmp.lt.s32.totalorder %s19, 3
      %p253 = pnand %p251, %p252
      %p254 = pneg %p253
      // Predicated region
      $region41: #{tpu_custom_call.1} parent=5 // pred_check
        _
      $region42: #{tpu_custom_call.1} parent=5 // pred_check_branch
        %256 = sbr.rel (%p253) target = $region44
      $region43: #{tpu_custom_call.1} parent=5 // pred_region
        %s257 = ssub.s32 %s19, 1
        %s258 = sand.u32 %s32, 1
        %s259 = scalar_lea.sflag [#allocation3], %s258
        %s260 = sand.u32 %s32, 1
        %s261 = smul.addr %s260, 16
        %s262 = scalar_lea.vmem [#allocation2], %s261
        // Predicated region
        $region45: #{tpu_custom_call.1} parent=43 // pred_check
          %p263 = pneg %p45
        $region46: #{tpu_custom_call.1} parent=43 // pred_check_branch
          %265 = sbr.rel (%p263) target = $region48
        $region47: #{tpu_custom_call.1} parent=43 // pred_region
          %266 = dma.done %s259, 256
        $region48: #{tpu_custom_call.1} parent=43 // pred_fallthru
          _
        // Predicated region
        $region49: #{tpu_custom_call.1} parent=43 // pred_check
          %p267 = pneg %p92
        $region50: #{tpu_custom_call.1} parent=43 // pred_check_branch
          %269 = sbr.rel (%p267) target = $region52
        $region51: #{tpu_custom_call.1} parent=43 // pred_region
          %270 = dma.done [#allocation6], 2048
        $region52: #{tpu_custom_call.1} parent=43 // pred_fallthru
          _
        %s271 = sand.u32 %s32, 1
        %s272 = scalar_lea.sflag [#allocation3], %s271
        %s273 = sand.u32 %s32, 1
        %s274 = smul.addr %s273, 16
        %s275 = scalar_lea.vmem [#allocation2], %s274
        %p276 = pneg %p45
        %p277 = pneg %p42
        %s278 = smul.u32 2, %s24
        %p279 = scmp.lt.s32.totalorder %s278, 3
        %s280 = scalar_select %p279, %s278, 3
        %s281 = scalar_lea.vmem %s1, %s280
        %p282 = pneg %p71
        %p283 = pneg %p68
        %p284 = pneg %p92
        %p285 = pneg %p89
        %p286 = pneg %p113
        %p287 = pneg %p110
        %p288 = pneg %p134
        %p289 = pneg %p131
        %p290 = pneg %p155
        %p291 = pneg %p152
        %p292 = pneg %p181
        %p293 = pneg %p178
        %s294 = sand.u32 %s168, 1
        %s295 = scalar_lea.sflag [#allocation4], %s294
        %s296 = sand.u32 %s168, 1
        %s297 = smul.addr %s296, 2
        %s298 = scalar_lea.vmem [#allocation7], %s297
        %s299 = smul.u32 2, %s24
        %s300 = smul.u32 2, %s24
        %p301 = scmp.lt.s32.totalorder %s300, 3
        %s302 = scalar_select %p301, %s300, 3
        %s303 = scalar_lea.vmem %s1, %s302
        %s304 = smul.u32 2, %s24
        %s305 = smul.u32 2, %s24
        %v306 = vld [vmem:[%s262] sm:$0xff]
        %v307 = vld [vmem:[%s262 + $0x8] sm:$0xff]
        %v308 = vld [vmem:[#allocation5] sm:$0xff]
        %v309 = vld [vmem:[#allocation5 + $0x8] sm:$0xff]
        %v310 = vld [vmem:[#allocation5 + $0x10] sm:$0xff]
        %v311 = vld [vmem:[#allocation5 + $0x18] sm:$0xff]
        %v312 = vld [vmem:[#allocation5 + $0x20] sm:$0xff]
        %v313 = vld [vmem:[#allocation5 + $0x28] sm:$0xff]
        %v314 = vld [vmem:[#allocation5 + $0x30] sm:$0xff]
        %v315 = vld [vmem:[#allocation5 + $0x38] sm:$0xff]
        %v316 = vld [vmem:[#allocation5 + $0x40] sm:$0xff]
        %v317 = vld [vmem:[#allocation5 + $0x48] sm:$0xff]
        %v318 = vld [vmem:[#allocation5 + $0x50] sm:$0xff]
        %v319 = vld [vmem:[#allocation5 + $0x58] sm:$0xff]
        %v320 = vld [vmem:[#allocation5 + $0x60] sm:$0xff]
        %v321 = vld [vmem:[#allocation5 + $0x68] sm:$0xff]
        %v322 = vld [vmem:[#allocation5 + $0x70] sm:$0xff]
        %v323 = vld [vmem:[#allocation5 + $0x78] sm:$0xff]
        %324 = vmatprep.subr.mxu0 0.0
        %325 = vmatpush1.msra.mxu0 %v308
        %326 = vmatprep.subr.mxu0 0.0
        %327 = vmatpush1.msra.mxu0 %v309
        %328 = vmatprep.subr.mxu0 0.0
        %329 = vmatpush1.msra.mxu0 %v310
        %330 = vmatprep.subr.mxu0 0.0
        %331 = vmatpush1.msra.mxu0 %v311
        %332 = vmatprep.subr.mxu0 0.0
        %333 = vmatpush1.msra.mxu0 %v312
        %334 = vmatprep.subr.mxu0 0.0
        %335 = vmatpush1.msra.mxu0 %v313
        %336 = vmatprep.subr.mxu0 0.0
        %337 = vmatpush1.msra.mxu0 %v314
        %338 = vmatprep.subr.mxu0 0.0
        %339 = vmatpush1.msra.mxu0 %v315
        %340 = vmatprep.subr.mxu0 0.0
        %341 = vmatpush1.msra.mxu0 %v316
        %342 = vmatprep.subr.mxu0 0.0
        %343 = vmatpush1.msra.mxu0 %v317
        %344 = vmatprep.subr.mxu0 0.0
        %345 = vmatpush1.msra.mxu0 %v318
        %346 = vmatprep.subr.mxu0 0.0
        %347 = vmatpush1.msra.mxu0 %v319
        %348 = vmatprep.subr.mxu0 0.0
        %349 = vmatpush1.msra.mxu0 %v320
        %350 = vmatprep.subr.mxu0 0.0
        %351 = vmatpush1.msra.mxu0 %v321
        %352 = vmatprep.subr.mxu0 0.0
        %353 = vmatpush1.msra.mxu0 %v322
        %354 = vmatprep.subr.mxu0 0.0
        %355 = vmatpush1.msra.mxu0 %v323
        %356 = vmatprep.subr.mxu0 0.0
        %357 = vmatpush1.msra.mxu0 0.0
        %358 = vmatprep.subr.mxu0 0.0
        %359 = vmatpush1.msra.mxu0 0.0
        %360 = vmatprep.subr.mxu0 0.0
        %361 = vmatpush1.msra.mxu0 0.0
        %362 = vmatprep.subr.mxu0 0.0
        %363 = vmatpush1.msra.mxu0 0.0
        %364 = vmatprep.subr.mxu0 0.0
        %365 = vmatpush1.msra.mxu0 0.0
        %366 = vmatprep.subr.mxu0 0.0
        %367 = vmatpush1.msra.mxu0 0.0
        %368 = vmatprep.subr.mxu0 0.0
        %369 = vmatpush1.msra.mxu0 0.0
        %370 = vmatprep.subr.mxu0 0.0
        %371 = vmatpush1.msra.mxu0 0.0
        %372 = vmatprep.subr.mxu0 0.0
        %373 = vmatpush1.msra.mxu0 0.0
        %374 = vmatprep.subr.mxu0 0.0
        %375 = vmatpush1.msra.mxu0 0.0
        %376 = vmatprep.subr.mxu0 0.0
        %377 = vmatpush1.msra.mxu0 0.0
        %378 = vmatprep.subr.mxu0 0.0
        %379 = vmatpush1.msra.mxu0 0.0
        %380 = vmatprep.subr.mxu0 0.0
        %381 = vmatpush1.msra.mxu0 0.0
        %382 = vmatprep.subr.mxu0 0.0
        %383 = vmatpush1.msra.mxu0 0.0
        %384 = vmatprep.subr.mxu0 0.0
        %385 = vmatpush1.msra.mxu0 0.0
        %386 = vmatprep.subr.mxu0 0.0
        %387 = vmatpush1.msra.mxu0 0.0
        %388 = vmatprep.mubr.f32.mxu0 0.0
        %389 = vmatmul.mubr.f32.gmra.mrb[0].mxu0 %v306
        %v390 = vpop.f32.mrb[0].mxu0
        %v391 = vadd.f32 0.0, %v390
        %v392 = vpop.f32.mrb[0].mxu0
        %393 = vmatprep.mubr.f32.mxu0 0.0
        %394 = vmatmul.mubr.f32.gmra.mrb[0].mxu0 %v307
        %v395 = vpop.f32.mrb[0].mxu0
        %v396 = vadd.f32 0.0, %v395
        %v397 = vpop.f32.mrb[0].mxu0
        %398 = vdwg.mxu0
        %v399 = vld [vmem:[%s3] sm:$0xff]
        %401 = vset.pattern.permute.xlu0 0
        %402 = vperm.xlu0 %401, %v399
        %v403 = vpop.permute.xlu0 %402
        %v405 = vmul.f32 %v391, %v403
        %v406 = vmul.f32 %v396, %v403
        %v407 = vld [vmem:[%s4] sm:$0xff]
        %v408 = vadd.f32 %v405, %v407
        %v409 = vadd.f32 %v406, %v407
        %v410 = vtanh.pop %v408
        %v411 = vtanh.pop %v409
        %v412 = vld [vmem:[%s303] sm:$0x1]
        %v413 = vld [vmem:[%s303 + $0x1] sm:$0x1]
        %v416 = vlaneseq
        %v417 = vshrl.u32 %v416, 7
        %v418 = vsub.s32 0, %v417
        %v419 = vrot.slane %v412, %v418
        %v420 = vlaneseq
        %v421 = vshrl.u32 %v420, 7
        %v422 = vsub.s32 0, %v421
        %v423 = vrot.slane %v413, %v422
        %v426 = vmul.f32 %v410, %v419
        %v427 = vmul.f32 %v411, %v423
        %v428 = vld [vmem:[%s5] sm:$0x1]
        %v430 = vlaneseq
        %v431 = vshrl.u32 %v430, 7
        %v432 = vsub.s32 0, %v431
        %v433 = vrot.slane %v428, %v432
        %v435 = vmul.f32 %v426, %v433
        %v436 = vmul.f32 %v427, %v433
        %437 = vadd.xlane.f32.xlu0 %v435
        %v438 = vpop.xlane.xlu0 %437
        %439 = vadd.xlane.f32.xlu0 %v436
        %v440 = vpop.xlane.xlu0 %439
        %v441 = vrot.slane %v438, 4
        %v442 = vmax.f32 %v438, %v441
        %v443 = vrot.slane %v442, 2
        %v444 = vmax.f32 %v442, %v443
        %v445 = vrot.slane %v444, 1
        %v446 = vmax.f32 %v444, %v445
        %v447 = vrot.slane %v440, 4
        %v448 = vmax.f32 %v440, %v447
        %v449 = vrot.slane %v448, 2
        %v450 = vmax.f32 %v448, %v449
        %v451 = vrot.slane %v450, 1
        %v452 = vmax.f32 %v450, %v451
        %v453 = vsub.f32 %v438, %v446
        %v454 = vsub.f32 %v440, %v452
        %v455 = vmul.f32 %v453, 1.442695
        %v456 = vpow.pop %v455
        %v457 = vmul.f32 %v454, 1.442695
        %v458 = vpow.pop %v457
        %v459 = vrot.slane %v456, 4
        %v460 = vadd.f32 %v456, %v459
        %v461 = vrot.slane %v460, 2
        %v462 = vadd.f32 %v460, %v461
        %v463 = vrot.slane %v462, 1
        %v464 = vadd.f32 %v462, %v463
        %v465 = vrot.slane %v458, 4
        %v466 = vadd.f32 %v458, %v465
        %v467 = vrot.slane %v466, 2
        %v468 = vadd.f32 %v466, %v467
        %v469 = vrot.slane %v468, 1
        %v470 = vadd.f32 %v468, %v469
        %v471 = vrcp.pop %v464
        %v472 = vmul.f32 %v456, %v471
        %v473 = vrcp.pop %v470
        %v474 = vmul.f32 %v458, %v473
        %v475 = vmul.f32 %v472, %v306
        %v476 = vmul.f32 %v474, %v307
        %v477 = vrot.slane %v475, 4
        %v478 = vadd.f32 %v475, %v477
        %v479 = vrot.slane %v478, 2
        %v480 = vadd.f32 %v478, %v479
        %v481 = vrot.slane %v480, 1
        %v482 = vadd.f32 %v480, %v481
        %v483 = vrot.slane %v476, 4
        %v484 = vadd.f32 %v476, %v483
        %v485 = vrot.slane %v484, 2
        %v486 = vadd.f32 %v484, %v485
        %v487 = vrot.slane %v486, 1
        %v488 = vadd.f32 %v486, %v487
        %v489 = vmul.f32 %v482, %v482
        %v490 = vmul.f32 %v488, %v488
        %491 = vadd.xlane.f32.xlu0 %v489
        %v492 = vpop.xlane.xlu0 %491
        %493 = vadd.xlane.f32.xlu0 %v490
        %v494 = vpop.xlane.xlu0 %493
        %v495 = vrsqrt.pop %v492
        %v496 = vmul.f32 %v492, %v495
        %vm497 = vcmp.eq.f32.partialorder %v492, inf
        %v498 = vsel %vm497, %v492, %v496
        %vm499 = vcmp.eq.f32.partialorder %v492, 0.0
        %v500 = vand.u32 %v492, 2147483648
        %v501 = vsel %vm499, %v500, %v498
        %v502 = vrsqrt.pop %v494
        %v503 = vmul.f32 %v494, %v502
        %vm504 = vcmp.eq.f32.partialorder %v494, inf
        %v505 = vsel %vm504, %v494, %v503
        %vm506 = vcmp.eq.f32.partialorder %v494, 0.0
        %v507 = vand.u32 %v494, 2147483648
        %v508 = vsel %vm506, %v507, %v505
        %v509 = vadd.f32 %v501, 1e-08
        %v510 = vadd.f32 %v508, 1e-08
        %v511 = vrcp.pop %v509
        %v512 = vmul.f32 %v482, %v511
        %v513 = vrcp.pop %v510
        %v514 = vmul.f32 %v488, %v513
        %515 = vst [vmem:[%s298] sm:$0x1] %v512
        %516 = vst [vmem:[%s298 + $0x1] sm:$0x1] %v514
        %s517 = sand.u32 %s168, 1
        %s518 = scalar_lea.sflag [#allocation4], %s517
        %s519 = sand.u32 %s168, 1
        %s520 = smul.addr %s519, 2
        %s521 = scalar_lea.vmem [#allocation7], %s520
        // Predicated region
        $region53: #{tpu_custom_call.1} parent=43 // pred_check
          %p522 = pneg %p178
        $region54: #{tpu_custom_call.1} parent=43 // pred_check_branch
          %524 = sbr.rel (%p522) target = $region56
        $region55: #{tpu_custom_call.1} parent=43 // pred_region
          %s525 = smul.u32 2, %s24
          %s527 = ssub.s32 32, 32
          %528 = vsyncadd %s518, %s527
          %s529 = smul.addr %s525, 16
          %s530 = scalar_lea.hbm %s6, %s529
          %s531 = sshll.u32 %s521, 4
          %s532 = int_to_ptr.vmem [resolvable:$true] %s531
          %537 = dma.vmem_to_hbm [thread:$0]  %s532, 32, %s530, %s518, 16, 16, 1
        $region56: #{tpu_custom_call.1} parent=43 // pred_fallthru
          _
      $region44: #{tpu_custom_call.1} parent=5 // pred_fallthru
        _
      %p538 = scmp.le.s32.totalorder 2, %s19
      // Predicated region
      $region57: #{tpu_custom_call.1} parent=5 // pred_check
        %p539 = pneg %p538
      $region58: #{tpu_custom_call.1} parent=5 // pred_check_branch
        %541 = sbr.rel (%p539) target = $region60
      $region59: #{tpu_custom_call.1} parent=5 // pred_region
        %s542 = ssub.s32 %s19, 2
        // Predicated region
        $region61: #{tpu_custom_call.1} parent=59 // pred_check
          %p543 = pneg %p184
        $region62: #{tpu_custom_call.1} parent=59 // pred_check_branch
          %545 = sbr.rel (%p543) target = $region64
        $region63: #{tpu_custom_call.1} parent=59 // pred_region
          %s546 = sand.u32 %s169, 1
          %s547 = scalar_lea.sflag [#allocation4], %s546
          %s548 = sand.u32 %s169, 1
          %s549 = smul.addr %s548, 2
          %s550 = scalar_lea.vmem [#allocation7], %s549
          %551 = dma.done %s547, 32
        $region64: #{tpu_custom_call.1} parent=59 // pred_fallthru
          _
      $region60: #{tpu_custom_call.1} parent=5 // pred_fallthru
        _
    $region6: #{tpu_custom_call.1} parent=1 // loop_footer
      %s23 = sadd.s32 1, %s19
    $region7: #{tpu_custom_call.1} parent=1 // loop_footer_branch
      %18 = sbr.rel target = $region3
    $region8: #{tpu_custom_call.1} parent=1 // loop_exit
      _
    %552 = vsyncpa [#allocation3], 1
    %s553 = scalar_lea.sflag [#allocation3], 1
    %554 = vsyncpa %s553, 1
    %555 = vsyncpa [#allocation6], 1
    %556 = vsyncpa [#allocation4], 1
    %s557 = scalar_lea.sflag [#allocation4], 1
    %558 = vsyncpa %s557, 1

</llo_original>
